<compile_context>
chip_gen: v5e
topology: v5e:2x2
jax: 0.10.0
libtpu: 0.0.40
codegen_flags: <defaults>
</compile_context>

<pallas_src>
import jax
import jax.numpy as jnp
from jax.experimental import pallas as pl
from jax.experimental.pallas import tpu as pltpu


def _round_up(x, m):
    return (x + m - 1) // m * m


def _vmem_budget_bytes():
    """~75% of per-core VMEM (v5e/v6e: ~96 MiB, v7x: 48 MiB); safe fallback 48 MiB."""
    cap = None
    try:
        cap = pltpu.get_tpu_info().vmem_capacity_bytes
    except Exception:
        cap = None
    if not cap:
        cap = 64 * 1024 * 1024  # assume the smallest (v7x) if detection fails
    return int(min(max(cap * 3 // 4, 32 * 1024 * 1024), 110 * 1024 * 1024))


def _linear_resident_kernel(x_ref, w_ref, b_ref, o_ref):
    # x: (TM, Dp)   w: (Dp, Cp) [VMEM-resident, constant block index]
    # b: (1, Cp) f32   o: (TM, Cp)
    acc = jnp.dot(x_ref[...], w_ref[...], preferred_element_type=jnp.float32)
    o_ref[...] = (acc + b_ref[...]).astype(o_ref.dtype)


def _linear_tiled_kernel(x_ref, w_ref, b_ref, o_ref, acc_ref):
    # x: (TM, TK)   w: (TK, TN) [pre-transposed in the wrapper]
    # b: (1, TN) f32   o: (TM, TN)   acc: (TM, TN) f32 (resident across K)
    k = pl.program_id(2)

    @pl.when(k == 0)
    def _():
        acc_ref[...] = jnp.zeros_like(acc_ref)

    acc_ref[...] += jnp.dot(x_ref[...], w_ref[...],
                            preferred_element_type=jnp.float32)

    @pl.when(k == pl.num_programs(2) - 1)
    def _():
        o_ref[...] = (acc_ref[...] + b_ref[...]).astype(o_ref.dtype)


def gait_recognition_head(x, weight, bias, *, compute_dtype=None,
                          allow_xla_fastpath=True):
    """y = x @ weight.T + bias, matching torch.nn.Linear semantics.

    x:      (..., input_dim)
    weight: (num_classes, input_dim)  -- PyTorch layout
    bias:   (num_classes,)
    compute_dtype: optional MXU operand dtype (e.g. jnp.bfloat16); accumulation
        and the bias add stay float32.  None keeps x.dtype (exact f32 path).
    allow_xla_fastpath: route tiny problems to plain XLA (launch overhead wins).
    """
    orig_shape = x.shape
    out_dtype = x.dtype
    input_dim = orig_shape[-1]
    num_classes, w_in = weight.shape
    assert w_in == input_dim, "weight/input_dim mismatch"

    x2d = x.reshape(-1, input_dim)
    n = x2d.shape[0]

    # ---- tiny-problem fast path ------------------------------------------
    if allow_xla_fastpath and 2 * n * input_dim * num_classes < (1 << 22):
        y = jnp.dot(x2d, weight.T, preferred_element_type=jnp.float32)
        y = (y + bias.astype(jnp.float32)).astype(out_dtype)
        return y.reshape(*orig_shape[:-1], num_classes)

    cdt = jnp.dtype(compute_dtype) if compute_dtype is not None else jnp.dtype(out_dtype)
    in_isize = cdt.itemsize
    out_isize = jnp.dtype(out_dtype).itemsize
    sub = 8 * max(1, 4 // in_isize)        # sublane pack: 8 (f32), 16 (bf16)

    budget = _vmem_budget_bytes()

    # Transpose the PyTorch-layout weight ONCE (amortized over all M tiles);
    # the kernel then runs a plain (TM,K)x(K,TN) contraction on the MXU.
    w_t = weight.T                          # (input_dim, num_classes)
    if cdt != x2d.dtype:
        x2d = x2d.astype(cdt)
    if cdt != w_t.dtype:
        w_t = w_t.astype(cdt)

    c_p = _round_up(num_classes, 128)       # lane-dense output / weight N
    d128 = _round_up(input_dim, 128)

    # ---- path + tile selection --------------------------------------------
    def resident_vmem(tm_):
        # double-buffered operands + output; bias negligible
        return 2 * (tm_ * d128 * in_isize          # x tile
                    + d128 * c_p * in_isize        # resident weight
                    + tm_ * c_p * out_isize        # output tile
                    + c_p * 4)                     # bias

    tm = min(512, _round_up(n, sub))
    use_resident = False
    for tm_try in (tm, 256, 128, 64, 32, sub):
        tm_try = min(tm, max(tm_try, sub))
        if resident_vmem(tm_try) <= budget:
            tm = tm_try
            use_resident = True
            break

    if use_resident:
        d_p = d128
        # v7x megacore: split a single-block M grid so both TCs get work.
        if tm >= n and n >= 4 * sub:
            tm = _round_up(-(-n // 2), sub)
    else:
        tk = min(512, d128)
        tn = min(256, c_p)
        d_p = _round_up(input_dim, tk)
        c_p = _round_up(c_p, tn)

    # ---- padding (K always exact; M only when a single tile exceeds n) -----
    n_p = tm if tm > n else n
    pad_m = n_p - n
    pad_k = d_p - input_dim
    if pad_m or pad_k:
        x2d = jnp.pad(x2d, ((0, pad_m), (0, pad_k)))
    pad_wn = c_p - num_classes
    if pad_k or pad_wn:
        w_t = jnp.pad(w_t, ((0, pad_k), (0, pad_wn)))
    b_p = bias.astype(jnp.float32)
    if pad_wn:
        b_p = jnp.pad(b_p, (0, pad_wn))
    b_p = b_p.reshape(1, c_p)

    gm = pl.cdiv(n_p, tm)

    if use_resident:
        grid = (gm,)
        in_specs = [
            pl.BlockSpec((tm, d_p), lambda i: (i, 0)),     # x: streamed over M
            pl.BlockSpec((d_p, c_p), lambda i: (0, 0)),    # weight: fetched once
            pl.BlockSpec((1, c_p), lambda i: (0, 0)),      # bias: fetched once
        ]
        out_specs = pl.BlockSpec((tm, c_p), lambda i: (i, 0))
        scratch = []
        kernel = _linear_resident_kernel
        dims = ("parallel",)
        bytes_accessed = (n_p * d_p * in_isize + d_p * c_p * in_isize
                          + n_p * c_p * out_isize + c_p * 4)
    else:
        gn = c_p // tn
        gk = d_p // tk
        grid = (gm, gn, gk)
        in_specs = [
            pl.BlockSpec((tm, tk), lambda i, j, k: (i, k)),   # x tile
            pl.BlockSpec((tk, tn), lambda i, j, k: (k, j)),   # weight tile (pre-T)
            pl.BlockSpec((1, tn), lambda i, j, k: (0, j)),    # bias tile
        ]
        out_specs = pl.BlockSpec((tm, tn), lambda i, j, k: (i, j))
        scratch = [pltpu.VMEM((tm, tn), jnp.float32)]
        kernel = _linear_tiled_kernel
        dims = ("parallel", "parallel", "arbitrary")
        bytes_accessed = (gn * n_p * d_p * in_isize     # x re-streamed per N tile
                          + gm * d_p * c_p * in_isize   # w re-streamed per M tile
                          + n_p * c_p * out_isize
                          + gm * gn * c_p * 4)

    flops = 2 * n_p * d_p * c_p

    out = pl.pallas_call(
        kernel,
        out_shape=jax.ShapeDtypeStruct((n_p, c_p), out_dtype),
        grid_spec=pltpu.PrefetchScalarGridSpec(
            num_scalar_prefetch=0,
            grid=grid,
            in_specs=in_specs,
            out_specs=out_specs,
            scratch_shapes=scratch,
        ),
        compiler_params=pltpu.CompilerParams(
            dimension_semantics=dims,
            vmem_limit_bytes=budget,
        ),
        cost_estimate=pl.CostEstimate(
            flops=int(flops), transcendentals=0,
            bytes_accessed=int(bytes_accessed)),
    )(x2d, w_t, b_p)

    out = out[:n, :num_classes]
    return out.reshape(*orig_shape[:-1], num_classes)


if __name__ == "__main__":
    key = jax.random.PRNGKey(0)
    k_x, k_w, k_b, k_x2 = jax.random.split(key, 4)

    # --- small demo at module-implied shapes (f32, exact path) -------------
    batch, seq, input_dim, num_classes = 2, 8, 32, 16
    weight = jax.random.normal(k_w, (num_classes, input_dim), dtype=jnp.float32) * 0.02
    bias = jax.random.normal(k_b, (num_classes,), dtype=jnp.float32) * 0.01
    x = jax.random.normal(k_x, (batch, seq, input_dim), dtype=jnp.float32)

    # Force the Pallas path (the default wrapper would route this tiny shape
    # to the XLA fast path).
    y = gait_recognition_head(x, weight, bias, allow_xla_fastpath=False)
    y = jax.block_until_ready(y)
    y_ref = x @ weight.T + bias
    assert y.shape == (batch, seq, num_classes)
    assert jnp.allclose(y, y_ref, atol=1e-5, rtol=1e-5)

    # --- second check: multi-M-tile, ragged M, padded C, bf16 compute ------
    b2, s2, d2, c2 = 5, 130, 256, 96     # n = 650 rows (ragged vs. 512 tile)
    w2 = jax.random.normal(k_w, (c2, d2), dtype=jnp.float32) * 0.02
    bias2 = jax.random.normal(k_b, (c2,), dtype=jnp.float32) * 0.01
    x2 = jax.random.normal(k_x2, (b2, s2, d2), dtype=jnp.float32)
    y2 = gait_recognition_head(x2, w2, bias2, compute_dtype=jnp.bfloat16,
                               allow_xla_fastpath=False)
    y2 = jax.block_until_ready(y2)
    y2_ref = x2 @ w2.T + bias2
    assert y2.shape == (b2, s2, c2)
    assert jnp.allclose(y2, y2_ref, atol=3e-2, rtol=3e-2)

    print("KERNEL_OK")
</pallas_src>

<mosaic_0001>
module attributes {stable_mosaic.version = 11 : i64} {
  func.func @_linear_resident_kernel(%arg0: i32, %arg1: memref<16x128xf32, #tpu.memory_space<vmem>>, %arg2: memref<128x128xf32, #tpu.memory_space<vmem>>, %arg3: memref<1x128xf32, #tpu.memory_space<vmem>>, %arg4: memref<16x128xf32, #tpu.memory_space<vmem>>) attributes {dimension_semantics = [#tpu.dimension_semantics<parallel>], iteration_bounds = array<i64: 1>, scalar_prefetch = 0 : i64, scratch_operands = 0 : i64, tpu.core_type = #tpu.core_type<tc>, window_params = [{transform_indices = @transform_0, window_bounds = array<i64: 16, 128>}, {pipeline_mode = #tpu.pipeline_mode<synchronous>, transform_indices = @transform_1, window_bounds = array<i64: 128, 128>}, {pipeline_mode = #tpu.pipeline_mode<synchronous>, transform_indices = @transform_2, window_bounds = array<i64: 1, 128>}, {transform_indices = @transform_3, window_bounds = array<i64: 16, 128>}]} {
    %c0 = arith.constant 0 : index
    %c0_0 = arith.constant 0 : index
    %0 = vector.load %arg1[%c0, %c0_0] : memref<16x128xf32, #tpu.memory_space<vmem>>, vector<16x128xf32>
    %c0_1 = arith.constant 0 : index
    %c0_2 = arith.constant 0 : index
    %1 = vector.load %arg2[%c0_1, %c0_2] : memref<128x128xf32, #tpu.memory_space<vmem>>, vector<128x128xf32>
    %cst = arith.constant dense<0.000000e+00> : vector<16x128xf32>
    %2 = tpu.matmul %0, %1, %cst {dimension_numbers = #tpu.dot_dimension_numbers<[1], [0], [0], [1], [0, 0, 1, 1], [], []>} : vector<16x128xf32>, vector<128x128xf32>, vector<16x128xf32> -> vector<16x128xf32>
    %c0_3 = arith.constant 0 : index
    %c0_4 = arith.constant 0 : index
    %3 = vector.load %arg3[%c0_3, %c0_4] : memref<1x128xf32, #tpu.memory_space<vmem>>, vector<1x128xf32>
    %4 = vector.broadcast %3 : vector<1x128xf32> to vector<16x128xf32>
    %5 = arith.addf %2, %4 : vector<16x128xf32>
    %c0_5 = arith.constant 0 : index
    %c0_6 = arith.constant 0 : index
    %6 = vector.load %arg4[%c0_5, %c0_6] : memref<16x128xf32, #tpu.memory_space<vmem>>, vector<16x128xf32>
    tpu.vector_store %arg4[%c0_5, %c0_6], %5 {strides = array<i32>} : memref<16x128xf32, #tpu.memory_space<vmem>>, vector<16x128xf32>,
    return
  }
  func.func @transform_0(%arg0: i32) -> (i32, i32) {
    %c0_i32 = arith.constant 0 : i32
    %c0_i32_0 = arith.constant 0 : i32
    return %arg0, %c0_i32 : i32, i32
  }
  func.func @transform_1(%arg0: i32) -> (i32, i32) {
    %c0_i32 = arith.constant 0 : i32
    %c0_i32_0 = arith.constant 0 : i32
    %c0_i32_1 = arith.constant 0 : i32
    return %c0_i32, %c0_i32_0 : i32, i32
  }
  func.func @transform_2(%arg0: i32) -> (i32, i32) {
    %c0_i32 = arith.constant 0 : i32
    %c0_i32_0 = arith.constant 0 : i32
    %c0_i32_1 = arith.constant 0 : i32
    return %c0_i32, %c0_i32_0 : i32, i32
  }
  func.func @transform_3(%arg0: i32) -> (i32, i32) {
    %c0_i32 = arith.constant 0 : i32
    %c0_i32_0 = arith.constant 0 : i32
    return %arg0, %c0_i32 : i32, i32
  }
}

</mosaic_0001>

<llo_original>
// kernel: tpu_custom_call.1
$region0: #{tpu_custom_call.1}
  #allocation0 [shape = 'u32[]', space=smem, size = 0x4, offset = 0x4, fixed_abs, tag = 'smem constant byte address 0x4 - core index']
  #allocation1 [shape = 'u32[72,128]{1,0:T(1,128)}', space=vmem, size = 0x9000, scoped, tag = 'internal scratch']
  %s0 = inlined_call_operand.hbm [shape: f32[16,128], index: 0, kind: input, shape index: {}]
  %s1 = inlined_call_operand.hbm [shape: f32[128,128], index: 1, kind: input, shape index: {}]
  %s2 = inlined_call_operand.vmem [shape: f32[1,128], index: 2, kind: input, shape index: {}]
  %s3 = inlined_call_operand.hbm [shape: f32[16,128], index: 3, kind: output, shape index: {}]
  %s4 = sld [smem:[#allocation0]]
  $region30: #{tpu_custom_call.1} parent=0
    _
  %s6 = ssub.s32 1, %s4
  %s7 = scalar_select 0, %s6, %s4
  $region1: #{tpu_custom_call.1} parent=0
    #allocation2 [shape = 'u8[8192]{0}', space=vmem, size = 0x2000, scoped, tag = 'input window, operand 0, single buffered']
    #allocation3 [shape = 's32[1]{0}', space=sflag, size = 0x4, scoped, tag = 'scoped memory for tpu_custom_call.1']
    #allocation4 [shape = 's32[1]{0}', space=sflag, size = 0x4, scoped, tag = 'scoped memory for tpu_custom_call.1']
    #allocation5 [shape = 'u8[65536]{0}', space=vmem, size = 0x10000, scoped, tag = 'input window, operand 1, single buffered']
    #allocation6 [shape = 's32[1]{0}', space=sflag, size = 0x4, scoped, tag = 'scoped memory for tpu_custom_call.1']
    #allocation7 [shape = 'u8[8192]{0}', space=vmem, size = 0x2000, scoped, tag = 'output window, operand 0, single buffered']
    %8 = vsyncpa [#allocation3], 0
    %9 = vsyncpa [#allocation6], 0
    %10 = vsyncpa [#allocation4], 0
    // Predicated region
    $region2: #{tpu_custom_call.1} parent=1 // pred_check
      _
    $region3: #{tpu_custom_call.1} parent=1 // pred_check_branch
      %12 = sbr.rel (0) target = $region5
    $region4: #{tpu_custom_call.1} parent=1 // pred_region
      %14 = vsyncadd [#allocation3], 0
      %s15 = sshll.u32 %s0, 4
      %s16 = int_to_ptr.hbm [resolvable:$true] %s15
      %s17 = sshll.u32 [#allocation2], 4
      %s18 = int_to_ptr.vmem [resolvable:$true] %s17
      %23 = dma.hbm_to_vmem [thread:$0]  %s16, 256, %s18, [#allocation3], 128, 128, 8
    $region5: #{tpu_custom_call.1} parent=1 // pred_fallthru
      _
    // Predicated region
    $region6: #{tpu_custom_call.1} parent=1 // pred_check
      _
    $region7: #{tpu_custom_call.1} parent=1 // pred_check_branch
      %25 = sbr.rel (0) target = $region9
    $region8: #{tpu_custom_call.1} parent=1 // pred_region
      %27 = vsyncadd [#allocation6], 0
      %s28 = sshll.u32 %s1, 4
      %s29 = int_to_ptr.hbm [resolvable:$true] %s28
      %s30 = sshll.u32 [#allocation5], 4
      %s31 = int_to_ptr.vmem [resolvable:$true] %s30
      %36 = dma.hbm_to_vmem [thread:$0]  %s29, 2048, %s31, [#allocation6], 128, 128, 8
    $region9: #{tpu_custom_call.1} parent=1 // pred_fallthru
      _
    // Predicated region
    $region10: #{tpu_custom_call.1} parent=1 // pred_check
      _
    $region11: #{tpu_custom_call.1} parent=1 // pred_check_branch
      %38 = sbr.rel (0) target = $region13
    $region12: #{tpu_custom_call.1} parent=1 // pred_region
      _
    $region13: #{tpu_custom_call.1} parent=1 // pred_fallthru
      _
    // Predicated region
    $region14: #{tpu_custom_call.1} parent=1 // pred_check
      _
    $region15: #{tpu_custom_call.1} parent=1 // pred_check_branch
      %40 = sbr.rel (0) target = $region17
    $region16: #{tpu_custom_call.1} parent=1 // pred_region
      %42 = dma.done [#allocation3], 256
    $region17: #{tpu_custom_call.1} parent=1 // pred_fallthru
      _
    // Predicated region
    $region18: #{tpu_custom_call.1} parent=1 // pred_check
      _
    $region19: #{tpu_custom_call.1} parent=1 // pred_check_branch
      %44 = sbr.rel (0) target = $region21
    $region20: #{tpu_custom_call.1} parent=1 // pred_region
      %46 = dma.done [#allocation6], 2048
    $region21: #{tpu_custom_call.1} parent=1 // pred_fallthru
      _
    %v47 = vld [vmem:[#allocation2] sm:$0xff]
    %v48 = vld [vmem:[#allocation2 + $0x8] sm:$0xff]
    %v49 = vld [vmem:[#allocation5] sm:$0xff]
    %v50 = vld [vmem:[#allocation5 + $0x8] sm:$0xff]
    %v51 = vld [vmem:[#allocation5 + $0x10] sm:$0xff]
    %v52 = vld [vmem:[#allocation5 + $0x18] sm:$0xff]
    %v53 = vld [vmem:[#allocation5 + $0x20] sm:$0xff]
    %v54 = vld [vmem:[#allocation5 + $0x28] sm:$0xff]
    %v55 = vld [vmem:[#allocation5 + $0x30] sm:$0xff]
    %v56 = vld [vmem:[#allocation5 + $0x38] sm:$0xff]
    %v57 = vld [vmem:[#allocation5 + $0x40] sm:$0xff]
    %v58 = vld [vmem:[#allocation5 + $0x48] sm:$0xff]
    %v59 = vld [vmem:[#allocation5 + $0x50] sm:$0xff]
    %v60 = vld [vmem:[#allocation5 + $0x58] sm:$0xff]
    %v61 = vld [vmem:[#allocation5 + $0x60] sm:$0xff]
    %v62 = vld [vmem:[#allocation5 + $0x68] sm:$0xff]
    %v63 = vld [vmem:[#allocation5 + $0x70] sm:$0xff]
    %v64 = vld [vmem:[#allocation5 + $0x78] sm:$0xff]
    %v65 = vld [vmem:[%s2] sm:$0x1]
    %v67 = vperm.slane %v65, 0
    %69 = vmatpush.msra.mxu0 %v64
    %70 = vmatpush.msra.mxu0 %v63
    %71 = vmatpush.msra.mxu0 %v62
    %72 = vmatpush.msra.mxu0 %v61
    %73 = vmatpush.msra.mxu0 %v60
    %74 = vmatpush.msra.mxu0 %v59
    %75 = vmatpush.msra.mxu0 %v58
    %76 = vmatpush.msra.mxu0 %v57
    %77 = vmatpush.msra.mxu0 %v56
    %78 = vmatpush.msra.mxu0 %v55
    %79 = vmatpush.msra.mxu0 %v54
    %80 = vmatpush.msra.mxu0 %v53
    %81 = vmatpush.msra.mxu0 %v52
    %82 = vmatpush.msra.mxu0 %v51
    %83 = vmatpush.msra.mxu0 %v50
    %84 = vmatpush.msra.mxu0 %v49
    %85 = vmatmul.f32.gmra.mxu0 %v47
    %v86 = vpop.f32.mrf.mxu0
    %v87 = vadd.f32 %v67, %v86
    %88 = vmatmul.f32.gmra.mxu0 %v48
    %v89 = vpop.f32.mrf.mxu0
    %v90 = vadd.f32 %v67, %v89
    %91 = vdwg.mxu0
    %92 = vst [vmem:[#allocation7] sm:$0xff] %v87
    %93 = vst [vmem:[#allocation7 + $0x8] sm:$0xff] %v90
    // Predicated region
    $region22: #{tpu_custom_call.1} parent=1 // pred_check
      _
    $region23: #{tpu_custom_call.1} parent=1 // pred_check_branch
      %95 = sbr.rel (0) target = $region25
    $region24: #{tpu_custom_call.1} parent=1 // pred_region
      %97 = vsyncadd [#allocation4], 0
      %s98 = sshll.u32 [#allocation7], 4
      %s99 = int_to_ptr.vmem [resolvable:$true] %s98
      %s100 = sshll.u32 %s3, 4
      %s101 = int_to_ptr.hbm [resolvable:$true] %s100
      %106 = dma.vmem_to_hbm [thread:$0]  %s99, 256, %s101, [#allocation4], 128, 128, 8
    $region25: #{tpu_custom_call.1} parent=1 // pred_fallthru
      _
    // Predicated region
    $region26: #{tpu_custom_call.1} parent=1 // pred_check
      _
    $region27: #{tpu_custom_call.1} parent=1 // pred_check_branch
      %108 = sbr.rel (0) target = $region29
    $region28: #{tpu_custom_call.1} parent=1 // pred_region
      %110 = dma.done [#allocation4], 256
    $region29: #{tpu_custom_call.1} parent=1 // pred_fallthru
      _
    %111 = vsyncpa [#allocation3], 1
    %112 = vsyncpa [#allocation6], 1
    %113 = vsyncpa [#allocation4], 1

</llo_original>
